<compile_context>
chip_gen: v6e
topology: v6e:2x2x1
jax: 0.10.0
libtpu: 0.0.40
codegen_flags: <defaults>
</compile_context>

<pallas_src>
import math
import functools

import jax
import jax.numpy as jnp
from jax import lax
from jax.experimental import pallas as pl
from jax.experimental.pallas import tpu as pltpu


# ---------------------------------------------------------------------------
# Fused kernel: node MLP + mean pooling + multi-head agent attention.
# One grid step handles TB graphs (TB*N node rows flattened into matmul M).
# ---------------------------------------------------------------------------
def _fused_kernel(x_ref, w1_ref, w2_ref, wq_ref, wkv_ref, b_ref,
                  agent_ref, nodes_ref, *,
                  n_agent, key_size, value_size, hid, inv_sqrt_k):
    TB, N, C = x_ref.shape
    AK = n_agent * key_size
    AV = n_agent * value_size

    bias = b_ref[...]                                   # (4, W) f32, padded rows
    b1 = bias[0:1, :hid]
    b2 = bias[1:2, :hid]
    bq = bias[2:3, :AK]
    bkv = bias[3:4, :AK + AV]

    # ---- node MLP: flat 2-D matmuls over all TB*N node rows (bf16 -> f32 acc) ----
    x2 = x_ref[...].reshape(TB * N, C)                  # bf16 (from wrapper)
    h1 = jnp.dot(x2, w1_ref[...],
                 preferred_element_type=jnp.float32) + b1        # (TB*N, hid) f32
    h1 = jnp.maximum(h1, 0.0)
    h2 = jnp.dot(h1.astype(jnp.bfloat16), w2_ref[...],
                 preferred_element_type=jnp.float32) + b2        # (TB*N, hid) f32

    h3 = h2.reshape(TB, N, hid)
    nodes_ref[...] = h3                                 # full h; wrapper drops depot

    # ---- graph feature (mean pool over all nodes) + depot feature ----
    g = jnp.mean(h3, axis=1)                            # (TB, hid)
    depot = h3[:, 0, :]                                 # (TB, hid) (row 0, aligned)
    gcat = jnp.concatenate([g, depot], axis=-1)         # (TB, 2*hid)  == depot_cat_g

    # ---- one wide matmul for q (all agents) and one for fused k|v (all agents) ----
    q_all = jnp.dot(gcat.astype(jnp.bfloat16), wq_ref[...],
                    preferred_element_type=jnp.float32) + bq     # (TB, A*K)
    kv = jnp.dot(h2.astype(jnp.bfloat16), wkv_ref[...],
                 preferred_element_type=jnp.float32) + bkv       # (TB*N, A*K + A*V)
    kv3 = kv.reshape(TB, N, AK + AV)

    # Depot column is masked out of the softmax (replaces the h[:, 1:, :] slice).
    node_is_depot = lax.broadcasted_iota(jnp.int32, (TB, N), 1) == 0

    # ---- per-agent attention on the VPU (n_agent is tiny, static unrolled) ----
    outs = []
    for a in range(n_agent):
        k_a = kv3[:, :, a * key_size:(a + 1) * key_size]                 # (TB, N, K)
        v_a = kv3[:, :, AK + a * value_size:AK + (a + 1) * value_size]   # (TB, N, V)
        q_a = q_all[:, a * key_size:(a + 1) * key_size]                  # (TB, K)

        # scores: broadcast q over nodes, multiply, lane-reduce over K (no MXU)
        u = jnp.sum(k_a * q_a[:, None, :], axis=-1) * inv_sqrt_k         # (TB, N) f32
        u = jnp.where(node_is_depot, -1e30, u)
        u = u - jnp.max(u, axis=-1, keepdims=True)
        e = jnp.exp(u)
        w = e * pl.reciprocal(jnp.sum(e, axis=-1, keepdims=True), approx=True)

        # weighted sum: broadcast weights over V, sublane-reduce over N (no MXU)
        outs.append(jnp.sum(v_a * w[:, :, None], axis=1))                # (TB, V)

    # single store of all agents' embeddings
    agent_ref[...] = jnp.concatenate(outs, axis=-1)[:, None, :]          # (TB, 1, A*V)


# ---------------------------------------------------------------------------
# One-time parameter preparation (stacking / fusing / bf16 casting).
# Hoisted out of the per-call wrapper per review feedback.
# ---------------------------------------------------------------------------
def prepare_params(params):
    ap = params['agents']
    n_agent, two_h, K = ap['wq'].shape
    hid = params['emb_w2'].shape[-1]
    V = ap['wv'].shape[-1]
    assert two_h == 2 * hid
    # scale factor and slicing stride must come from the same K
    assert params['key_size'] == K, (params['key_size'], K)

    AK, AV = n_agent * K, n_agent * V

    # per-agent weights stacked along the output-feature (lane) axis
    wq_all = jnp.transpose(ap['wq'], (1, 0, 2)).reshape(two_h, AK)       # (2H, A*K)
    wk_all = jnp.transpose(ap['wk'], (1, 0, 2)).reshape(hid, AK)         # (H, A*K)
    wv_all = jnp.transpose(ap['wv'], (1, 0, 2)).reshape(hid, AV)         # (H, A*V)
    wkv_all = jnp.concatenate([wk_all, wv_all], axis=-1)                 # (H, A*(K+V))

    # all six bias rows fused into one padded (4, W) f32 array
    W = max(hid, AK + AV)

    def pad_row(row, width):
        row = row.reshape(1, -1)
        return jnp.pad(row, ((0, 0), (0, width - row.shape[-1])))

    biases = jnp.concatenate([
        pad_row(params['emb_b1'], W),
        pad_row(params['emb_b2'], W),
        pad_row(ap['bq'].reshape(1, AK), W),
        pad_row(jnp.concatenate([ap['bk'].reshape(1, AK),
                                 ap['bv'].reshape(1, AV)], axis=-1), W),
    ], axis=0).astype(jnp.float32)

    return {
        'w1': params['emb_w1'].astype(jnp.bfloat16),
        'w2': params['emb_w2'].astype(jnp.bfloat16),
        'wq': wq_all.astype(jnp.bfloat16),
        'wkv': wkv_all.astype(jnp.bfloat16),
        'biases': biases,
        'n_agent': n_agent, 'key_size': K, 'value_size': V,
        'hid': hid, 'in_chnl': params['emb_w1'].shape[0],
    }


def _pick_batch_block(n_batch):
    # >=2 grid steps when possible so v7x's two TensorCores both get work
    # (grid axis is "parallel"); each step still flattens TB*N rows into the
    # matmul M dimension. v5e/v6e (1 TC) are unaffected.
    if n_batch <= 1:
        return max(n_batch, 1)
    for tb in range(n_batch // 2, 0, -1):
        if n_batch % tb == 0:
            return tb
    return 1


# ---------------------------------------------------------------------------
# Forward wrapper: one pallas_call for the whole module.
# ---------------------------------------------------------------------------
def agent_and_node_embedding(x, prep, n_nodes, n_batch, *, batch_block=None):
    C, hid = prep['in_chnl'], prep['hid']
    A, K, V = prep['n_agent'], prep['key_size'], prep['value_size']
    AV = A * V

    x3 = x.reshape(n_batch, n_nodes, C).astype(jnp.bfloat16)   # MXU operand in bf16

    TB = batch_block if batch_block is not None else _pick_batch_block(n_batch)
    assert n_batch % TB == 0
    grid_b = n_batch // TB

    kern = functools.partial(_fused_kernel, n_agent=A, key_size=K, value_size=V,
                             hid=hid, inv_sqrt_k=1.0 / math.sqrt(K))

    # NOTE: all operands total a few KB -> trivially fits scoped VMEM on
    # v5e/v6e (32 MiB) and v7x (32 MiB scoped / 64 MiB physical). If scaled up
    # (large B/N/hid), shrink TB so double-buffered tiles fit v7x's budget and
    # set vmem_limit_bytes explicitly.
    agent3, nodes_full = pl.pallas_call(
        kern,
        out_shape=(jax.ShapeDtypeStruct((n_batch, 1, AV), jnp.float32),
                   jax.ShapeDtypeStruct((n_batch, n_nodes, hid), jnp.float32)),
        grid=(grid_b,),
        in_specs=[
            pl.BlockSpec((TB, n_nodes, C), lambda i: (i, 0, 0)),
            pl.BlockSpec(prep['w1'].shape, lambda i: (0, 0)),
            pl.BlockSpec(prep['w2'].shape, lambda i: (0, 0)),
            pl.BlockSpec(prep['wq'].shape, lambda i: (0, 0)),
            pl.BlockSpec(prep['wkv'].shape, lambda i: (0, 0)),
            pl.BlockSpec(prep['biases'].shape, lambda i: (0, 0)),
        ],
        out_specs=(
            pl.BlockSpec((TB, 1, AV), lambda i: (i, 0, 0)),
            pl.BlockSpec((TB, n_nodes, hid), lambda i: (i, 0, 0)),
        ),
        compiler_params=pltpu.CompilerParams(
            dimension_semantics=("parallel",)),
    )(x3, prep['w1'], prep['w2'], prep['wq'], prep['wkv'], prep['biases'])

    agent_embs = agent3.reshape(n_batch, A, V)      # torch.cat(agents, dim=1)
    nodes_no_depot = nodes_full[:, 1:, :]           # free HBM-side slice (wrapper)
    return agent_embs, nodes_no_depot


# ---------------------------------------------------------------------------
# Pure-JAX f32 reference (correctness check for the Pallas path).
# ---------------------------------------------------------------------------
def reference(x, params, n_nodes, n_batch):
    h = jnp.maximum(x @ params['emb_w1'] + params['emb_b1'], 0.0)
    h = h @ params['emb_w2'] + params['emb_b2']
    nodes_h = h.reshape(n_batch, n_nodes, -1)
    g_h = nodes_h.mean(axis=1, keepdims=True)
    depot_cat_g = jnp.concatenate([g_h, nodes_h[:, 0:1, :]], axis=-1)
    f = nodes_h[:, 1:, :]
    ap = params['agents']
    outs = []
    for a in range(ap['wq'].shape[0]):
        q = depot_cat_g @ ap['wq'][a] + ap['bq'][a]
        k = f @ ap['wk'][a] + ap['bk'][a]
        v = f @ ap['wv'][a] + ap['bv'][a]
        u = jnp.einsum('bnk,bik->bni', k, q) / math.sqrt(params['key_size'])
        u_ = jnp.swapaxes(jax.nn.softmax(u, axis=-2), -1, -2)     # (B,1,N-1)
        outs.append(jnp.einsum('bin,bnv->biv', u_, v))
    return jnp.concatenate(outs, axis=1), f


def init_params(key, in_chnl, hid, n_agent, key_size, value_size):
    ks = jax.random.split(key, 10)
    s = 0.1
    return {
        'key_size': key_size,
        'emb_w1': s * jax.random.normal(ks[0], (in_chnl, hid), jnp.float32),
        'emb_b1': s * jax.random.normal(ks[1], (1, hid), jnp.float32),
        'emb_w2': s * jax.random.normal(ks[2], (hid, hid), jnp.float32),
        'emb_b2': s * jax.random.normal(ks[3], (1, hid), jnp.float32),
        'agents': {   # vehicle_embd_type == 'MH': distinct weights per agent
            'wq': s * jax.random.normal(ks[4], (n_agent, 2 * hid, key_size), jnp.float32),
            'bq': s * jax.random.normal(ks[5], (n_agent, 1, key_size), jnp.float32),
            'wk': s * jax.random.normal(ks[6], (n_agent, hid, key_size), jnp.float32),
            'bk': s * jax.random.normal(ks[7], (n_agent, 1, key_size), jnp.float32),
            'wv': s * jax.random.normal(ks[8], (n_agent, hid, value_size), jnp.float32),
            'bv': s * jax.random.normal(ks[9], (n_agent, 1, value_size), jnp.float32),
        },
    }


if __name__ == "__main__":
    n_batch, n_nodes = 2, 9
    in_chnl, hid_chnl = 4, 32
    n_agent, key_size, value_size = 3, 16, 16

    root = jax.random.PRNGKey(0)
    pkey, xkey = jax.random.split(root)
    params = init_params(pkey, in_chnl, hid_chnl, n_agent, key_size, value_size)
    x = jax.random.normal(xkey, (n_batch * n_nodes, in_chnl), jnp.float32)

    prep = prepare_params(params)          # one-time weight stacking / fusion / bf16
    agent_embs, nodes_no_depot = agent_and_node_embedding(x, prep, n_nodes, n_batch)
    jax.block_until_ready((agent_embs, nodes_no_depot))

    ref_embs, ref_nodes = reference(x, params, n_nodes, n_batch)
    assert agent_embs.shape == (n_batch, n_agent, value_size), agent_embs.shape
    assert nodes_no_depot.shape == (n_batch, n_nodes - 1, hid_chnl), nodes_no_depot.shape
    # tolerance loosened for bf16 MXU operands + approx reciprocal (EUP vrcp)
    assert jnp.allclose(agent_embs, ref_embs, atol=2e-2, rtol=2e-2)
    assert jnp.allclose(nodes_no_depot, ref_nodes, atol=2e-2, rtol=2e-2)

    print("KERNEL_OK")
</pallas_src>

<mosaic_0001>
module attributes {stable_mosaic.version = 11 : i64} {
  func.func @_fused_kernel(%arg0: i32, %arg1: memref<1x9x4xbf16, #tpu.memory_space<vmem>>, %arg2: memref<4x32xbf16, #tpu.memory_space<vmem>>, %arg3: memref<32x32xbf16, #tpu.memory_space<vmem>>, %arg4: memref<64x48xbf16, #tpu.memory_space<vmem>>, %arg5: memref<32x96xbf16, #tpu.memory_space<vmem>>, %arg6: memref<4x96xf32, #tpu.memory_space<vmem>>, %arg7: memref<1x1x48xf32, #tpu.memory_space<vmem>>, %arg8: memref<1x9x32xf32, #tpu.memory_space<vmem>>) attributes {dimension_semantics = [#tpu.dimension_semantics<parallel>], iteration_bounds = array<i64: 2>, scalar_prefetch = 0 : i64, scratch_operands = 0 : i64, tpu.core_type = #tpu.core_type<tc>, window_params = [{transform_indices = @transform_0, window_bounds = array<i64: 1, 9, 4>}, {pipeline_mode = #tpu.pipeline_mode<synchronous>, transform_indices = @transform_1, window_bounds = array<i64: 4, 32>}, {pipeline_mode = #tpu.pipeline_mode<synchronous>, transform_indices = @transform_2, window_bounds = array<i64: 32, 32>}, {pipeline_mode = #tpu.pipeline_mode<synchronous>, transform_indices = @transform_3, window_bounds = array<i64: 64, 48>}, {pipeline_mode = #tpu.pipeline_mode<synchronous>, transform_indices = @transform_4, window_bounds = array<i64: 32, 96>}, {pipeline_mode = #tpu.pipeline_mode<synchronous>, transform_indices = @transform_5, window_bounds = array<i64: 4, 96>}, {transform_indices = @transform_6, window_bounds = array<i64: 1, 1, 48>}, {transform_indices = @transform_7, window_bounds = array<i64: 1, 9, 32>}]} {
    %c0 = arith.constant 0 : index
    %c0_0 = arith.constant 0 : index
    %0 = vector.load %arg6[%c0, %c0_0] : memref<4x96xf32, #tpu.memory_space<vmem>>, vector<4x96xf32>
    %1 = vector.extract_strided_slice %0 {offsets = [0, 0], sizes = [1, 32], strides = [1, 1]} : vector<4x96xf32> to vector<1x32xf32>
    %2 = vector.extract_strided_slice %0 {offsets = [1, 0], sizes = [1, 32], strides = [1, 1]} : vector<4x96xf32> to vector<1x32xf32>
    %3 = vector.extract_strided_slice %0 {offsets = [2, 0], sizes = [1, 48], strides = [1, 1]} : vector<4x96xf32> to vector<1x48xf32>
    %4 = vector.extract_strided_slice %0 {offsets = [3, 0], sizes = [1, 96], strides = [1, 1]} : vector<4x96xf32> to vector<1x96xf32>
    %c0_1 = arith.constant 0 : index
    %c0_2 = arith.constant 0 : index
    %c0_3 = arith.constant 0 : index
    %5 = vector.load %arg1[%c0_1, %c0_2, %c0_3] : memref<1x9x4xbf16, #tpu.memory_space<vmem>>, vector<1x9x4xbf16>
    %6 = vector.shape_cast %5 : vector<1x9x4xbf16> to vector<9x4xbf16>
    %c0_4 = arith.constant 0 : index
    %c0_5 = arith.constant 0 : index
    %7 = vector.load %arg2[%c0_4, %c0_5] : memref<4x32xbf16, #tpu.memory_space<vmem>>, vector<4x32xbf16>
    %cst = arith.constant dense<0.000000e+00> : vector<9x32xf32>
    %8 = tpu.matmul %6, %7, %cst {dimension_numbers = #tpu.dot_dimension_numbers<[1], [0], [0], [1], [0, 0, 1, 1], [], []>} : vector<9x4xbf16>, vector<4x32xbf16>, vector<9x32xf32> -> vector<9x32xf32>
    %9 = vector.broadcast %1 : vector<1x32xf32> to vector<9x32xf32>
    %10 = arith.addf %8, %9 : vector<9x32xf32>
    %cst_6 = arith.constant 0.000000e+00 : f32
    %11 = vector.broadcast %cst_6 : f32 to vector<9x32xf32>
    %12 = arith.maximumf %10, %11 : vector<9x32xf32>
    %13 = arith.truncf %12 : vector<9x32xf32> to vector<9x32xbf16>
    %c0_7 = arith.constant 0 : index
    %c0_8 = arith.constant 0 : index
    %14 = vector.load %arg3[%c0_7, %c0_8] : memref<32x32xbf16, #tpu.memory_space<vmem>>, vector<32x32xbf16>
    %cst_9 = arith.constant dense<0.000000e+00> : vector<9x32xf32>
    %15 = tpu.matmul %13, %14, %cst_9 {dimension_numbers = #tpu.dot_dimension_numbers<[1], [0], [0], [1], [0, 0, 1, 1], [], []>} : vector<9x32xbf16>, vector<32x32xbf16>, vector<9x32xf32> -> vector<9x32xf32>
    %16 = vector.broadcast %2 : vector<1x32xf32> to vector<9x32xf32>
    %17 = arith.addf %15, %16 : vector<9x32xf32>
    %18 = vector.shape_cast %17 : vector<9x32xf32> to vector<1x9x32xf32>
    %c0_10 = arith.constant 0 : index
    %c0_11 = arith.constant 0 : index
    %c0_12 = arith.constant 0 : index
    %19 = vector.load %arg8[%c0_10, %c0_11, %c0_12] : memref<1x9x32xf32, #tpu.memory_space<vmem>>, vector<1x9x32xf32>
    tpu.vector_store %arg8[%c0_10, %c0_11, %c0_12], %18 {strides = array<i32>} : memref<1x9x32xf32, #tpu.memory_space<vmem>>, vector<1x9x32xf32>,
    %cst_13 = arith.constant dense<0.000000e+00> : vector<1x32xf32>
    %20 = vector.multi_reduction <add>, %18, %cst_13 [1] : vector<1x9x32xf32> to vector<1x32xf32>
    %cst_14 = arith.constant 9.000000e+00 : f32
    %21 = vector.broadcast %cst_14 : f32 to vector<1x32xf32>
    %22 = arith.divf %20, %21 : vector<1x32xf32>
    %23 = vector.extract_strided_slice %18 {offsets = [0, 0, 0], sizes = [1, 1, 32], strides = [1, 1, 1]} : vector<1x9x32xf32> to vector<1x1x32xf32>
    %24 = vector.shape_cast %23 : vector<1x1x32xf32> to vector<1x32xf32>
    %25 = tpu.concatenate %22, %24 in 1 : vector<1x32xf32>, vector<1x32xf32> -> vector<1x64xf32>
    %26 = arith.truncf %25 : vector<1x64xf32> to vector<1x64xbf16>
    %c0_15 = arith.constant 0 : index
    %c0_16 = arith.constant 0 : index
    %27 = vector.load %arg4[%c0_15, %c0_16] : memref<64x48xbf16, #tpu.memory_space<vmem>>, vector<64x48xbf16>
    %cst_17 = arith.constant dense<0.000000e+00> : vector<1x48xf32>
    %28 = tpu.matmul %26, %27, %cst_17 {dimension_numbers = #tpu.dot_dimension_numbers<[1], [0], [0], [1], [0, 0, 1, 1], [], []>} : vector<1x64xbf16>, vector<64x48xbf16>, vector<1x48xf32> -> vector<1x48xf32>
    %29 = arith.addf %28, %3 : vector<1x48xf32>
    %30 = arith.truncf %17 : vector<9x32xf32> to vector<9x32xbf16>
    %c0_18 = arith.constant 0 : index
    %c0_19 = arith.constant 0 : index
    %31 = vector.load %arg5[%c0_18, %c0_19] : memref<32x96xbf16, #tpu.memory_space<vmem>>, vector<32x96xbf16>
    %cst_20 = arith.constant dense<0.000000e+00> : vector<9x96xf32>
    %32 = tpu.matmul %30, %31, %cst_20 {dimension_numbers = #tpu.dot_dimension_numbers<[1], [0], [0], [1], [0, 0, 1, 1], [], []>} : vector<9x32xbf16>, vector<32x96xbf16>, vector<9x96xf32> -> vector<9x96xf32>
    %33 = vector.broadcast %4 : vector<1x96xf32> to vector<9x96xf32>
    %34 = arith.addf %32, %33 : vector<9x96xf32>
    %35 = vector.shape_cast %34 : vector<9x96xf32> to vector<1x9x96xf32>
    %36 = tpu.iota {dimensions = array<i32: 1>} : vector<1x9xi32>
    %c0_i32 = arith.constant 0 : i32
    %37 = vector.broadcast %c0_i32 : i32 to vector<1x9xi32>
    %38 = arith.cmpi eq, %36, %37 : vector<1x9xi32>
    %39 = vector.extract_strided_slice %35 {offsets = [0, 0, 0], sizes = [1, 9, 16], strides = [1, 1, 1]} : vector<1x9x96xf32> to vector<1x9x16xf32>
    %40 = vector.extract_strided_slice %35 {offsets = [0, 0, 48], sizes = [1, 9, 16], strides = [1, 1, 1]} : vector<1x9x96xf32> to vector<1x9x16xf32>
    %41 = vector.extract_strided_slice %29 {offsets = [0, 0], sizes = [1, 16], strides = [1, 1]} : vector<1x48xf32> to vector<1x16xf32>
    %42 = vector.shape_cast %41 : vector<1x16xf32> to vector<1x1x16xf32>
    %43 = vector.broadcast %42 : vector<1x1x16xf32> to vector<1x9x16xf32>
    %44 = arith.mulf %39, %43 : vector<1x9x16xf32>
    %cst_21 = arith.constant dense<0.000000e+00> : vector<1x9xf32>
    %45 = vector.multi_reduction <add>, %44, %cst_21 [2] : vector<1x9x16xf32> to vector<1x9xf32>
    %cst_22 = arith.constant 2.500000e-01 : f32
    %46 = vector.broadcast %cst_22 : f32 to vector<1x9xf32>
    %47 = arith.mulf %45, %46 : vector<1x9xf32>
    %cst_23 = arith.constant -1.000000e+30 : f32
    %48 = vector.broadcast %cst_23 : f32 to vector<1x9xf32>
    %49 = arith.select %38, %48, %47 : vector<1x9xi1>, vector<1x9xf32>
    %cst_24 = arith.constant dense<0xFF800000> : vector<1xf32>
    %50 = vector.multi_reduction <maximumf>, %49, %cst_24 [1] : vector<1x9xf32> to vector<1xf32>
    %51 = vector.shape_cast %50 : vector<1xf32> to vector<1x1xf32>
    %52 = vector.broadcast %51 : vector<1x1xf32> to vector<1x9xf32>
    %53 = arith.subf %49, %52 : vector<1x9xf32>
    %54 = math.exp %53 : vector<1x9xf32>
    %cst_25 = arith.constant dense<0.000000e+00> : vector<1xf32>
    %55 = vector.multi_reduction <add>, %54, %cst_25 [1] : vector<1x9xf32> to vector<1xf32>
    %56 = vector.shape_cast %55 : vector<1xf32> to vector<1x1xf32>
    %57 = tpu.reciprocal %56 {approx = true} : vector<1x1xf32> -> vector<1x1xf32>
    %58 = vector.broadcast %57 : vector<1x1xf32> to vector<1x9xf32>
    %59 = arith.mulf %54, %58 : vector<1x9xf32>
    %60 = vector.shape_cast %59 : vector<1x9xf32> to vector<1x9x1xf32>
    %61 = vector.broadcast %60 : vector<1x9x1xf32> to vector<1x9x16xf32>
    %62 = arith.mulf %40, %61 : vector<1x9x16xf32>
    %cst_26 = arith.constant dense<0.000000e+00> : vector<1x16xf32>
    %63 = vector.multi_reduction <add>, %62, %cst_26 [1] : vector<1x9x16xf32> to vector<1x16xf32>
    %64 = vector.extract_strided_slice %35 {offsets = [0, 0, 16], sizes = [1, 9, 16], strides = [1, 1, 1]} : vector<1x9x96xf32> to vector<1x9x16xf32>
    %65 = vector.extract_strided_slice %35 {offsets = [0, 0, 64], sizes = [1, 9, 16], strides = [1, 1, 1]} : vector<1x9x96xf32> to vector<1x9x16xf32>
    %66 = vector.extract_strided_slice %29 {offsets = [0, 16], sizes = [1, 16], strides = [1, 1]} : vector<1x48xf32> to vector<1x16xf32>
    %67 = vector.shape_cast %66 : vector<1x16xf32> to vector<1x1x16xf32>
    %68 = vector.broadcast %67 : vector<1x1x16xf32> to vector<1x9x16xf32>
    %69 = arith.mulf %64, %68 : vector<1x9x16xf32>
    %cst_27 = arith.constant dense<0.000000e+00> : vector<1x9xf32>
    %70 = vector.multi_reduction <add>, %69, %cst_27 [2] : vector<1x9x16xf32> to vector<1x9xf32>
    %cst_28 = arith.constant 2.500000e-01 : f32
    %71 = vector.broadcast %cst_28 : f32 to vector<1x9xf32>
    %72 = arith.mulf %70, %71 : vector<1x9xf32>
    %cst_29 = arith.constant -1.000000e+30 : f32
    %73 = vector.broadcast %cst_29 : f32 to vector<1x9xf32>
    %74 = arith.select %38, %73, %72 : vector<1x9xi1>, vector<1x9xf32>
    %cst_30 = arith.constant dense<0xFF800000> : vector<1xf32>
    %75 = vector.multi_reduction <maximumf>, %74, %cst_30 [1] : vector<1x9xf32> to vector<1xf32>
    %76 = vector.shape_cast %75 : vector<1xf32> to vector<1x1xf32>
    %77 = vector.broadcast %76 : vector<1x1xf32> to vector<1x9xf32>
    %78 = arith.subf %74, %77 : vector<1x9xf32>
    %79 = math.exp %78 : vector<1x9xf32>
    %cst_31 = arith.constant dense<0.000000e+00> : vector<1xf32>
    %80 = vector.multi_reduction <add>, %79, %cst_31 [1] : vector<1x9xf32> to vector<1xf32>
    %81 = vector.shape_cast %80 : vector<1xf32> to vector<1x1xf32>
    %82 = tpu.reciprocal %81 {approx = true} : vector<1x1xf32> -> vector<1x1xf32>
    %83 = vector.broadcast %82 : vector<1x1xf32> to vector<1x9xf32>
    %84 = arith.mulf %79, %83 : vector<1x9xf32>
    %85 = vector.shape_cast %84 : vector<1x9xf32> to vector<1x9x1xf32>
    %86 = vector.broadcast %85 : vector<1x9x1xf32> to vector<1x9x16xf32>
    %87 = arith.mulf %65, %86 : vector<1x9x16xf32>
    %cst_32 = arith.constant dense<0.000000e+00> : vector<1x16xf32>
    %88 = vector.multi_reduction <add>, %87, %cst_32 [1] : vector<1x9x16xf32> to vector<1x16xf32>
    %89 = vector.extract_strided_slice %35 {offsets = [0, 0, 32], sizes = [1, 9, 16], strides = [1, 1, 1]} : vector<1x9x96xf32> to vector<1x9x16xf32>
    %90 = vector.extract_strided_slice %35 {offsets = [0, 0, 80], sizes = [1, 9, 16], strides = [1, 1, 1]} : vector<1x9x96xf32> to vector<1x9x16xf32>
    %91 = vector.extract_strided_slice %29 {offsets = [0, 32], sizes = [1, 16], strides = [1, 1]} : vector<1x48xf32> to vector<1x16xf32>
    %92 = vector.shape_cast %91 : vector<1x16xf32> to vector<1x1x16xf32>
    %93 = vector.broadcast %92 : vector<1x1x16xf32> to vector<1x9x16xf32>
    %94 = arith.mulf %89, %93 : vector<1x9x16xf32>
    %cst_33 = arith.constant dense<0.000000e+00> : vector<1x9xf32>
    %95 = vector.multi_reduction <add>, %94, %cst_33 [2] : vector<1x9x16xf32> to vector<1x9xf32>
    %cst_34 = arith.constant 2.500000e-01 : f32
    %96 = vector.broadcast %cst_34 : f32 to vector<1x9xf32>
    %97 = arith.mulf %95, %96 : vector<1x9xf32>
    %cst_35 = arith.constant -1.000000e+30 : f32
    %98 = vector.broadcast %cst_35 : f32 to vector<1x9xf32>
    %99 = arith.select %38, %98, %97 : vector<1x9xi1>, vector<1x9xf32>
    %cst_36 = arith.constant dense<0xFF800000> : vector<1xf32>
    %100 = vector.multi_reduction <maximumf>, %99, %cst_36 [1] : vector<1x9xf32> to vector<1xf32>
    %101 = vector.shape_cast %100 : vector<1xf32> to vector<1x1xf32>
    %102 = vector.broadcast %101 : vector<1x1xf32> to vector<1x9xf32>
    %103 = arith.subf %99, %102 : vector<1x9xf32>
    %104 = math.exp %103 : vector<1x9xf32>
    %cst_37 = arith.constant dense<0.000000e+00> : vector<1xf32>
    %105 = vector.multi_reduction <add>, %104, %cst_37 [1] : vector<1x9xf32> to vector<1xf32>
    %106 = vector.shape_cast %105 : vector<1xf32> to vector<1x1xf32>
    %107 = tpu.reciprocal %106 {approx = true} : vector<1x1xf32> -> vector<1x1xf32>
    %108 = vector.broadcast %107 : vector<1x1xf32> to vector<1x9xf32>
    %109 = arith.mulf %104, %108 : vector<1x9xf32>
    %110 = vector.shape_cast %109 : vector<1x9xf32> to vector<1x9x1xf32>
    %111 = vector.broadcast %110 : vector<1x9x1xf32> to vector<1x9x16xf32>
    %112 = arith.mulf %90, %111 : vector<1x9x16xf32>
    %cst_38 = arith.constant dense<0.000000e+00> : vector<1x16xf32>
    %113 = vector.multi_reduction <add>, %112, %cst_38 [1] : vector<1x9x16xf32> to vector<1x16xf32>
    %114 = tpu.concatenate %63, %88, %113 in 1 : vector<1x16xf32>, vector<1x16xf32>, vector<1x16xf32> -> vector<1x48xf32>
    %115 = vector.shape_cast %114 : vector<1x48xf32> to vector<1x1x48xf32>
    %c0_39 = arith.constant 0 : index
    %c0_40 = arith.constant 0 : index
    %c0_41 = arith.constant 0 : index
    %116 = vector.load %arg7[%c0_39, %c0_40, %c0_41] : memref<1x1x48xf32, #tpu.memory_space<vmem>>, vector<1x1x48xf32>
    tpu.vector_store %arg7[%c0_39, %c0_40, %c0_41], %115 {strides = array<i32>} : memref<1x1x48xf32, #tpu.memory_space<vmem>>, vector<1x1x48xf32>,
    return
  }
  func.func @transform_0(%arg0: i32) -> (i32, i32, i32) {
    %c0_i32 = arith.constant 0 : i32
    %c0_i32_0 = arith.constant 0 : i32
    %c0_i32_1 = arith.constant 0 : i32
    return %arg0, %c0_i32, %c0_i32_0 : i32, i32, i32
  }
  func.func @transform_1(%arg0: i32) -> (i32, i32) {
    %c0_i32 = arith.constant 0 : i32
    %c0_i32_0 = arith.constant 0 : i32
    %c0_i32_1 = arith.constant 0 : i32
    return %c0_i32, %c0_i32_0 : i32, i32
  }
  func.func @transform_2(%arg0: i32) -> (i32, i32) {
    %c0_i32 = arith.constant 0 : i32
    %c0_i32_0 = arith.constant 0 : i32
    %c0_i32_1 = arith.constant 0 : i32
    return %c0_i32, %c0_i32_0 : i32, i32
  }
  func.func @transform_3(%arg0: i32) -> (i32, i32) {
    %c0_i32 = arith.constant 0 : i32
    %c0_i32_0 = arith.constant 0 : i32
    %c0_i32_1 = arith.constant 0 : i32
    return %c0_i32, %c0_i32_0 : i32, i32
  }
  func.func @transform_4(%arg0: i32) -> (i32, i32) {
    %c0_i32 = arith.constant 0 : i32
    %c0_i32_0 = arith.constant 0 : i32
    %c0_i32_1 = arith.constant 0 : i32
    return %c0_i32, %c0_i32_0 : i32, i32
  }
  func.func @transform_5(%arg0: i32) -> (i32, i32) {
    %c0_i32 = arith.constant 0 : i32
    %c0_i32_0 = arith.constant 0 : i32
    %c0_i32_1 = arith.constant 0 : i32
    return %c0_i32, %c0_i32_0 : i32, i32
  }
  func.func @transform_6(%arg0: i32) -> (i32, i32, i32) {
    %c0_i32 = arith.constant 0 : i32
    %c0_i32_0 = arith.constant 0 : i32
    %c0_i32_1 = arith.constant 0 : i32
    return %arg0, %c0_i32, %c0_i32_0 : i32, i32, i32
  }
  func.func @transform_7(%arg0: i32) -> (i32, i32, i32) {
    %c0_i32 = arith.constant 0 : i32
    %c0_i32_0 = arith.constant 0 : i32
    %c0_i32_1 = arith.constant 0 : i32
    return %arg0, %c0_i32, %c0_i32_0 : i32, i32, i32
  }
}

</mosaic_0001>

<llo_original>
// kernel: tpu_custom_call.1
$region0: #{tpu_custom_call.1}
  #allocation0 [shape = 'u32[]', space=smem, size = 0x4, offset = 0x4, fixed_abs, tag = 'smem constant byte address 0x4 - core index']
  #allocation1 [shape = 'u32[144,128]{1,0:T(1,128)}', space=vmem, size = 0x12000, scoped, tag = 'internal scratch']
  %s0 = inlined_call_operand.vmem [shape: bf16[2,9,4], index: 0, kind: input, shape index: {}]
  %s1 = inlined_call_operand.vmem [shape: bf16[4,32], index: 1, kind: input, shape index: {}]
  %s2 = inlined_call_operand.vmem [shape: bf16[32,32], index: 2, kind: input, shape index: {}]
  %s3 = inlined_call_operand.vmem [shape: bf16[64,48], index: 3, kind: input, shape index: {}]
  %s4 = inlined_call_operand.vmem [shape: bf16[32,96], index: 4, kind: input, shape index: {}]
  %s5 = inlined_call_operand.vmem [shape: f32[4,96], index: 5, kind: input, shape index: {}]
  %s6 = inlined_call_operand.hbm [shape: f32[2,1,48], index: 6, kind: output, shape index: {0}]
  %s7 = inlined_call_operand.vmem [shape: f32[2,9,32], index: 7, kind: output, shape index: {1}]
  %8 = xla_tuple %s6, %s7
  %s9 = sld [smem:[#allocation0]]
  $region65: #{tpu_custom_call.1} parent=0
    _
  %s11 = ssub.s32 1, %s9
  %s12 = scalar_select 0, %s11, %s9
  $region1: #{tpu_custom_call.1} parent=0
    #allocation2 [shape = 'u8[1024]{0}', space=vmem, size = 0x400, scoped, tag = 'output window, operand 0']
    #allocation3 [shape = 's32[2]{0}', space=sflag, size = 0x8, scoped, tag = 'scoped memory for tpu_custom_call.1']
    %13 = vsyncpa [#allocation3], 0
    %s14 = scalar_lea.sflag [#allocation3], 1
    %15 = vsyncpa %s14, 0
    loop: start=0, step=1, limit=4
    $region2: #{tpu_custom_call.1} parent=1 // loop_pre_header
      _
    $region3: #{tpu_custom_call.1} parent=1 // loop_header
      %s17 = sphi 0, %s21
      %p18 = scmp.ge.s32.totalorder %s17, 4
      %s27 = sphi 0, %s29
      %s30 = sphi 0, %s27
      %s31 = sphi 0, %s30
      %s47 = sphi 0, %s31
      %s51 = sphi 0, %s51
      %s53 = sphi 0, %s51
      %s54 = sphi 0, %s53
      %s68 = sphi 0, %s54
      %s72 = sphi 0, %s72
      %s74 = sphi 0, %s72
      %s75 = sphi 0, %s74
      %s89 = sphi 0, %s75
      %s93 = sphi 0, %s93
      %s95 = sphi 0, %s93
      %s96 = sphi 0, %s95
      %s110 = sphi 0, %s96
      %s114 = sphi 0, %s114
      %s116 = sphi 0, %s114
      %s117 = sphi 0, %s116
      %s131 = sphi 0, %s117
      %s135 = sphi 0, %s135
      %s137 = sphi 0, %s135
      %s138 = sphi 0, %s137
      %s152 = sphi 0, %s138
      %s158 = sphi 0, %s160
      %s161 = sphi 0, %s158
      %s162 = sphi 0, %s161
      %s178 = sphi 0, %s162
      %s184 = sphi 0, %s186
      %s187 = sphi 0, %s184
      %s188 = sphi 0, %s187
      %s204 = sphi 0, %s188
    $region4: #{tpu_custom_call.1} parent=1 // loop_header_branch
      %20 = sbr.rel (%p18) target = $region8
    $region5: #{tpu_custom_call.1} parent=1 // loop_body
      %s22 = ssub.s32 %s17, 1
      %s23 = ssub.s32 %s17, 2
      %s24 = sadd.s32 %s17, 1
      %s25 = ssub.s32 %s17, %s24
      %p26 = scmp.eq.s32.totalorder %s25, 0
      %s28 = sadd.s32 %s27, 1
      %s29 = scalar_select %p26, %s27, %s28
      %p32 = pneg %p26
      %p33 = scmp.eq.s32.totalorder %s17, 1
      %p34 = por %p32, %p33
      %p35 = scmp.ne.s32.totalorder %s27, %s30
      %p36 = scmp.eq.s32.totalorder %s17, 0
      %p37 = por %p35, %p36
      %p38 = scmp.ne.s32.totalorder %s27, %s30
      %p39 = scmp.eq.s32.totalorder %s22, 1
      %p40 = por %p38, %p39
      %p41 = scmp.ne.s32.totalorder %s30, %s31
      %p42 = scmp.eq.s32.totalorder %s22, 0
      %p43 = por %p41, %p42
      %p44 = scmp.ne.s32.totalorder %s30, %s31
      %p45 = scmp.eq.s32.totalorder %s23, 1
      %p46 = por %p44, %p45
      %p48 = scmp.ne.s32.totalorder %s31, %s47
      %p49 = scmp.eq.s32.totalorder %s23, 0
      %p50 = por %p48, %p49
      %s52 = sadd.s32 %s51, 1
      %p55 = scmp.eq.s32.totalorder %s17, 1
      %p56 = scmp.ne.s32.totalorder %s51, %s53
      %p57 = scmp.eq.s32.totalorder %s17, 0
      %p58 = por %p56, %p57
      %p59 = scmp.ne.s32.totalorder %s51, %s53
      %p60 = scmp.eq.s32.totalorder %s22, 1
      %p61 = por %p59, %p60
      %p62 = scmp.ne.s32.totalorder %s53, %s54
      %p63 = scmp.eq.s32.totalorder %s22, 0
      %p64 = por %p62, %p63
      %p65 = scmp.ne.s32.totalorder %s53, %s54
      %p66 = scmp.eq.s32.totalorder %s23, 1
      %p67 = por %p65, %p66
      %p69 = scmp.ne.s32.totalorder %s54, %s68
      %p70 = scmp.eq.s32.totalorder %s23, 0
      %p71 = por %p69, %p70
      %s73 = sadd.s32 %s72, 1
      %p76 = scmp.eq.s32.totalorder %s17, 1
      %p77 = scmp.ne.s32.totalorder %s72, %s74
      %p78 = scmp.eq.s32.totalorder %s17, 0
      %p79 = por %p77, %p78
      %p80 = scmp.ne.s32.totalorder %s72, %s74
      %p81 = scmp.eq.s32.totalorder %s22, 1
      %p82 = por %p80, %p81
      %p83 = scmp.ne.s32.totalorder %s74, %s75
      %p84 = scmp.eq.s32.totalorder %s22, 0
      %p85 = por %p83, %p84
      %p86 = scmp.ne.s32.totalorder %s74, %s75
      %p87 = scmp.eq.s32.totalorder %s23, 1
      %p88 = por %p86, %p87
      %p90 = scmp.ne.s32.totalorder %s75, %s89
      %p91 = scmp.eq.s32.totalorder %s23, 0
      %p92 = por %p90, %p91
      %s94 = sadd.s32 %s93, 1
      %p97 = scmp.eq.s32.totalorder %s17, 1
      %p98 = scmp.ne.s32.totalorder %s93, %s95
      %p99 = scmp.eq.s32.totalorder %s17, 0
      %p100 = por %p98, %p99
      %p101 = scmp.ne.s32.totalorder %s93, %s95
      %p102 = scmp.eq.s32.totalorder %s22, 1
      %p103 = por %p101, %p102
      %p104 = scmp.ne.s32.totalorder %s95, %s96
      %p105 = scmp.eq.s32.totalorder %s22, 0
      %p106 = por %p104, %p105
      %p107 = scmp.ne.s32.totalorder %s95, %s96
      %p108 = scmp.eq.s32.totalorder %s23, 1
      %p109 = por %p107, %p108
      %p111 = scmp.ne.s32.totalorder %s96, %s110
      %p112 = scmp.eq.s32.totalorder %s23, 0
      %p113 = por %p111, %p112
      %s115 = sadd.s32 %s114, 1
      %p118 = scmp.eq.s32.totalorder %s17, 1
      %p119 = scmp.ne.s32.totalorder %s114, %s116
      %p120 = scmp.eq.s32.totalorder %s17, 0
      %p121 = por %p119, %p120
      %p122 = scmp.ne.s32.totalorder %s114, %s116
      %p123 = scmp.eq.s32.totalorder %s22, 1
      %p124 = por %p122, %p123
      %p125 = scmp.ne.s32.totalorder %s116, %s117
      %p126 = scmp.eq.s32.totalorder %s22, 0
      %p127 = por %p125, %p126
      %p128 = scmp.ne.s32.totalorder %s116, %s117
      %p129 = scmp.eq.s32.totalorder %s23, 1
      %p130 = por %p128, %p129
      %p132 = scmp.ne.s32.totalorder %s117, %s131
      %p133 = scmp.eq.s32.totalorder %s23, 0
      %p134 = por %p132, %p133
      %s136 = sadd.s32 %s135, 1
      %p139 = scmp.eq.s32.totalorder %s17, 1
      %p140 = scmp.ne.s32.totalorder %s135, %s137
      %p141 = scmp.eq.s32.totalorder %s17, 0
      %p142 = por %p140, %p141
      %p143 = scmp.ne.s32.totalorder %s135, %s137
      %p144 = scmp.eq.s32.totalorder %s22, 1
      %p145 = por %p143, %p144
      %p146 = scmp.ne.s32.totalorder %s137, %s138
      %p147 = scmp.eq.s32.totalorder %s22, 0
      %p148 = por %p146, %p147
      %p149 = scmp.ne.s32.totalorder %s137, %s138
      %p150 = scmp.eq.s32.totalorder %s23, 1
      %p151 = por %p149, %p150
      %p153 = scmp.ne.s32.totalorder %s138, %s152
      %p154 = scmp.eq.s32.totalorder %s23, 0
      %p155 = por %p153, %p154
      %s156 = ssub.s32 %s17, %s24
      %p157 = scmp.eq.s32.totalorder %s156, 0
      %s159 = sadd.s32 %s158, 1
      %s160 = scalar_select %p157, %s158, %s159
      %p163 = pneg %p157
      %p164 = scmp.eq.s32.totalorder %s17, 1
      %p165 = por %p163, %p164
      %p166 = scmp.ne.s32.totalorder %s158, %s161
      %p167 = scmp.eq.s32.totalorder %s17, 0
      %p168 = por %p166, %p167
      %p169 = scmp.ne.s32.totalorder %s158, %s161
      %p170 = scmp.eq.s32.totalorder %s22, 1
      %p171 = por %p169, %p170
      %p172 = scmp.ne.s32.totalorder %s161, %s162
      %p173 = scmp.eq.s32.totalorder %s22, 0
      %p174 = por %p172, %p173
      %p175 = scmp.ne.s32.totalorder %s161, %s162
      %p176 = scmp.eq.s32.totalorder %s23, 1
      %p177 = por %p175, %p176
      %p179 = scmp.ne.s32.totalorder %s162, %s178
      %p180 = scmp.eq.s32.totalorder %s23, 0
      %p181 = por %p179, %p180
      %s182 = ssub.s32 %s17, %s24
      %p183 = scmp.eq.s32.totalorder %s182, 0
      %s185 = sadd.s32 %s184, 1
      %s186 = scalar_select %p183, %s184, %s185
      %p189 = pneg %p183
      %p190 = scmp.eq.s32.totalorder %s17, 1
      %p191 = por %p189, %p190
      %p192 = scmp.ne.s32.totalorder %s184, %s187
      %p193 = scmp.eq.s32.totalorder %s17, 0
      %p194 = por %p192, %p193
      %p195 = scmp.ne.s32.totalorder %s184, %s187
      %p196 = scmp.eq.s32.totalorder %s22, 1
      %p197 = por %p195, %p196
      %p198 = scmp.ne.s32.totalorder %s187, %s188
      %p199 = scmp.eq.s32.totalorder %s22, 0
      %p200 = por %p198, %p199
      %p201 = scmp.ne.s32.totalorder %s187, %s188
      %p202 = scmp.eq.s32.totalorder %s23, 1
      %p203 = por %p201, %p202
      %p205 = scmp.ne.s32.totalorder %s188, %s204
      %p206 = scmp.eq.s32.totalorder %s23, 0
      %p207 = por %p205, %p206
      %p208 = scmp.le.s32.totalorder 1, %s17
      %p209 = scmp.lt.s32.totalorder %s17, 3
      %p210 = pnand %p208, %p209
      %p211 = pneg %p210
      // Predicated region
      $region9: #{tpu_custom_call.1} parent=5 // pred_check
        _
      $region10: #{tpu_custom_call.1} parent=5 // pred_check_branch
        %213 = sbr.rel (%p210) target = $region12
      $region11: #{tpu_custom_call.1} parent=5 // pred_region
        %s214 = ssub.s32 %s17, 1
        // Predicated region
        $region13: #{tpu_custom_call.1} parent=11 // pred_check
          %p215 = pneg %p64
        $region14: #{tpu_custom_call.1} parent=11 // pred_check_branch
          %217 = sbr.rel (%p215) target = $region16
        $region15: #{tpu_custom_call.1} parent=11 // pred_region
          _
        $region16: #{tpu_custom_call.1} parent=11 // pred_fallthru
          _
        // Predicated region
        $region17: #{tpu_custom_call.1} parent=11 // pred_check
          %p218 = pneg %p85
        $region18: #{tpu_custom_call.1} parent=11 // pred_check_branch
          %220 = sbr.rel (%p218) target = $region20
        $region19: #{tpu_custom_call.1} parent=11 // pred_region
          _
        $region20: #{tpu_custom_call.1} parent=11 // pred_fallthru
          _
        // Predicated region
        $region21: #{tpu_custom_call.1} parent=11 // pred_check
          %p221 = pneg %p106
        $region22: #{tpu_custom_call.1} parent=11 // pred_check_branch
          %223 = sbr.rel (%p221) target = $region24
        $region23: #{tpu_custom_call.1} parent=11 // pred_region
          _
        $region24: #{tpu_custom_call.1} parent=11 // pred_fallthru
          _
        // Predicated region
        $region25: #{tpu_custom_call.1} parent=11 // pred_check
          %p224 = pneg %p127
        $region26: #{tpu_custom_call.1} parent=11 // pred_check_branch
          %226 = sbr.rel (%p224) target = $region28
        $region27: #{tpu_custom_call.1} parent=11 // pred_region
          _
        $region28: #{tpu_custom_call.1} parent=11 // pred_fallthru
          _
        // Predicated region
        $region29: #{tpu_custom_call.1} parent=11 // pred_check
          %p227 = pneg %p148
        $region30: #{tpu_custom_call.1} parent=11 // pred_check_branch
          %229 = sbr.rel (%p227) target = $region32
        $region31: #{tpu_custom_call.1} parent=11 // pred_region
          _
        $region32: #{tpu_custom_call.1} parent=11 // pred_fallthru
          _
      $region12: #{tpu_custom_call.1} parent=5 // pred_fallthru
        _
      %p230 = scmp.lt.s32.totalorder %s17, 2
      // Predicated region
      $region33: #{tpu_custom_call.1} parent=5 // pred_check
        %p231 = pneg %p230
      $region34: #{tpu_custom_call.1} parent=5 // pred_check_branch
        %233 = sbr.rel (%p231) target = $region36
      $region35: #{tpu_custom_call.1} parent=5 // pred_region
        // Predicated region
        $region37: #{tpu_custom_call.1} parent=35 // pred_check
          %p234 = pneg %p37
        $region38: #{tpu_custom_call.1} parent=35 // pred_check_branch
          %236 = sbr.rel (%p234) target = $region40
        $region39: #{tpu_custom_call.1} parent=35 // pred_region
          %p237 = scmp.lt.s32.totalorder %s17, 1
          %s238 = scalar_select %p237, %s17, 1
          %s239 = smul.addr %s238, 2
          %s240 = smul.addr %s239, 4
          %s241 = scalar_lea.vmem %s0, %s240
        $region40: #{tpu_custom_call.1} parent=35 // pred_fallthru
          _
      $region36: #{tpu_custom_call.1} parent=5 // pred_fallthru
        _
      %p242 = scmp.le.s32.totalorder 1, %s17
      %p243 = scmp.lt.s32.totalorder %s17, 3
      %p244 = pnand %p242, %p243
      %p245 = pneg %p244
      // Predicated region
      $region41: #{tpu_custom_call.1} parent=5 // pred_check
        _
      $region42: #{tpu_custom_call.1} parent=5 // pred_check_branch
        %247 = sbr.rel (%p244) target = $region44
      $region43: #{tpu_custom_call.1} parent=5 // pred_region
        %s248 = ssub.s32 %s17, 1
        %p249 = scmp.lt.s32.totalorder %s22, 1
        %s250 = scalar_select %p249, %s22, 1
        %s251 = smul.addr %s250, 2
        %s252 = smul.addr %s251, 4
        %s253 = scalar_lea.vmem %s0, %s252
        %p254 = pneg %p43
        %p255 = pneg %p40
        %p256 = pneg %p64
        %p257 = pneg %p61
        %p258 = pneg %p85
        %p259 = pneg %p82
        %p260 = pneg %p106
        %p261 = pneg %p103
        %p262 = pneg %p127
        %p263 = pneg %p124
        %p264 = pneg %p148
        %p265 = pneg %p145
        %p266 = pneg %p174
        %p267 = pneg %p171
        %s268 = sand.u32 %s161, 1
        %s269 = scalar_lea.sflag [#allocation3], %s268
        %s270 = sand.u32 %s161, 1
        %s271 = scalar_lea.vmem [#allocation2], %s270
        %p272 = pneg %p200
        %p273 = pneg %p197
        %p274 = scmp.lt.s32.totalorder %s22, 1
        %s275 = scalar_select %p274, %s22, 1
        %s276 = smul.addr %s275, 2
        %s277 = smul.addr %s276, 8
        %s278 = scalar_lea.vmem %s7, %s277
        %p279 = scmp.lt.s32.totalorder %s22, 1
        %s280 = scalar_select %p279, %s22, 1
        %s281 = smul.addr %s280, 2
        %s282 = smul.addr %s281, 4
        %s283 = scalar_lea.vmem %s0, %s282
        %p284 = scmp.lt.s32.totalorder %s22, 1
        %s285 = scalar_select %p284, %s22, 1
        %s286 = smul.addr %s285, 2
        %s287 = smul.addr %s286, 8
        %s288 = scalar_lea.vmem %s7, %s287
        %v290 = vld [vmem:[%s5] sm:$0xf]
        %v291 = vld [vmem:[%s283] sm:$0xf]
        %v292 = vld [vmem:[%s283 + $0x4] sm:$0x1]
        %v293 = vld [vmem:[%s1] sm:$0x3]
        %v294 = vlaneseq
        %v295 = vshrl.u32 %v294, 7
        %v296 = vsub.s32 0, %v295
        %v297 = vrot.slane %v290, %v296
        %v300 = vunpack.c.l.b16 %v291
        %v301 = vunpack.c.l.b16 %v292
        %v302 = vpack.c.b16 %v301, %v300
        %vm303 = vcmask 31744
        %v305 = vsel %vm303, %v302, 0
        %vm307 = vcmask 1041408
        %v309 = vsel %vm307, %v293, 0
        %311 = vmatprep.subr.bf16.mxu0 0
        %312 = vmatpush1.bf16.msra.mxu0 0
        %313 = vmatprep.subr.bf16.mxu0 0
        %314 = vmatpush1.bf16.msra.mxu0 0
        %315 = vmatprep.subr.bf16.mxu0 0
        %316 = vmatpush1.bf16.msra.mxu0 0
        %317 = vmatprep.subr.bf16.mxu0 0
        %318 = vmatpush1.bf16.msra.mxu0 0
        %319 = vmatprep.subr.bf16.mxu0 0
        %320 = vmatpush1.bf16.msra.mxu0 0
        %321 = vmatprep.subr.bf16.mxu0 0
        %322 = vmatpush1.bf16.msra.mxu0 0
        %323 = vmatprep.subr.bf16.mxu0 0
        %324 = vmatpush1.bf16.msra.mxu0 0
        %325 = vmatprep.subr.bf16.mxu0 0
        %326 = vmatpush1.bf16.msra.mxu0 %v309
        %327 = vmatprep.subr.bf16.mxu0 0
        %328 = vmatpush2.bf16.msra.mxu0 0
        %329 = vmatprep.subr.bf16.mxu0 0
        %330 = vmatpush2.bf16.msra.mxu0 0
        %331 = vmatprep.subr.bf16.mxu0 0
        %332 = vmatpush2.bf16.msra.mxu0 0
        %333 = vmatprep.subr.bf16.mxu0 0
        %334 = vmatpush2.bf16.msra.mxu0 0
        %335 = vmatprep.subr.bf16.mxu0 0
        %336 = vmatpush2.bf16.msra.mxu0 0
        %337 = vmatprep.subr.bf16.mxu0 0
        %338 = vmatpush2.bf16.msra.mxu0 0
        %339 = vmatprep.subr.bf16.mxu0 0
        %340 = vmatpush2.bf16.msra.mxu0 0
        %341 = vmatprep.subr.bf16.mxu0 0
        %342 = vmatpush2.bf16.msra.mxu0 0
        %343 = vmatprep.mubr.bf16.mxu0 0
        %344 = vmatmul.mubr.bf16.gmra.mxu0 %v305
        %v345 = vpop.f32.mrf.mxu0
        %v346 = vadd.f32 %v297, %v345
        %v347 = vpop.f32.mrf.mxu0
        %v348 = vpop.f32.mrf.mxu0
        %v349 = vadd.f32 %v297, %v348
        %v350 = vpop.f32.mrf.mxu0
        %351 = vdwg.mxu0
        %v352 = vmax.f32 %v346, 0.0
        %v353 = vmax.f32 %v349, 0.0
        %v354 = vpack.c.bf16 %v353, %v352
        %v355 = vld [vmem:[%s2] sm:$0xf]
        %v356 = vld [vmem:[%s2 + $0x4] sm:$0xf]
        %v357 = vld [vmem:[%s2 + $0x8] sm:$0xf]
        %v358 = vld [vmem:[%s2 + $0xc] sm:$0xf]
        %v359 = vlaneseq
        %v360 = vshrl.u32 %v359, 7
        %v361 = vsub.s32 1, %v360
        %v362 = vrot.slane %v290, %v361
        %v367 = vunpack.c.l.b16 %v355
        %v368 = vunpack.c.l.b16 %v356
        %v369 = vunpack.c.l.b16 %v357
        %v370 = vunpack.c.l.b16 %v358
        %v371 = vpack.c.b16 %v368, %v367
        %v372 = vpack.c.b16 %v370, %v369
        %vm375 = vcmask 261120
        %v377 = vsel %vm375, %v354, 0
        %379 = vmatprep.subr.bf16.mxu0 0
        %380 = vmatpush1.bf16.msra.mxu0 0
        %381 = vmatprep.subr.bf16.mxu0 0
        %382 = vmatpush1.bf16.msra.mxu0 0
        %383 = vmatprep.subr.bf16.mxu0 0
        %384 = vmatpush1.bf16.msra.mxu0 0
        %385 = vmatprep.subr.bf16.mxu0 0
        %386 = vmatpush1.bf16.msra.mxu0 0
        %387 = vmatprep.subr.bf16.mxu0 0
        %388 = vmatpush1.bf16.msra.mxu0 0
        %389 = vmatprep.subr.bf16.mxu0 0
        %390 = vmatpush1.bf16.msra.mxu0 0
        %391 = vmatprep.subr.bf16.mxu0 0
        %392 = vmatpush1.bf16.msra.mxu0 %v372
        %393 = vmatprep.subr.bf16.mxu0 0
        %394 = vmatpush1.bf16.msra.mxu0 %v371
        %395 = vmatprep.subr.bf16.mxu0 0
        %396 = vmatpush2.bf16.msra.mxu0 0
        %397 = vmatprep.subr.bf16.mxu0 0
        %398 = vmatpush2.bf16.msra.mxu0 0
        %399 = vmatprep.subr.bf16.mxu0 0
        %400 = vmatpush2.bf16.msra.mxu0 0
        %401 = vmatprep.subr.bf16.mxu0 0
        %402 = vmatpush2.bf16.msra.mxu0 0
        %403 = vmatprep.subr.bf16.mxu0 0
        %404 = vmatpush2.bf16.msra.mxu0 0
        %405 = vmatprep.subr.bf16.mxu0 0
        %406 = vmatpush2.bf16.msra.mxu0 0
        %407 = vmatprep.subr.bf16.mxu0 0
        %408 = vmatpush2.bf16.msra.mxu0 0
        %409 = vmatprep.subr.bf16.mxu0 0
        %410 = vmatpush2.bf16.msra.mxu0 0
        %411 = vmatprep.mubr.bf16.mxu0 0
        %412 = vmatmul.mubr.bf16.gmra.mxu0 %v377
        %v413 = vpop.f32.mrf.mxu0
        %v414 = vadd.f32 %v362, %v413
        %v415 = vpop.f32.mrf.mxu0
        %v416 = vpop.f32.mrf.mxu0
        %v417 = vadd.f32 %v362, %v416
        %v418 = vpop.f32.mrf.mxu0
        %419 = vdwg.mxu0
        %420 = vst.msk [vmem:[%s288] sm:$0xff] %vm375, %v414
        %vm421 = vcmask 253952
        %422 = vst.msk [vmem:[%s288 + $0x8] sm:$0x1] %vm421, %v417
        %v423 = vsel %vm375, %v414, 0.0
        %v424 = vsel %vm421, %v417, 0.0
        %v425 = vadd.f32 %v423, %v424
        %v426 = vrot.slane %v425, 4
        %v427 = vadd.f32 %v425, %v426
        %v428 = vrot.slane %v427, 2
        %v429 = vadd.f32 %v427, %v428
        %v430 = vrot.slane %v429, 1
        %v431 = vadd.f32 %v429, %v430
        %v432 = vrcp.pop 9.0
        %v433 = vmul.f32 %v431, %v432
        %435 = vrot.lane.b32.xlu0 %v414, 32
        %v436 = vpop.permute.xlu0 %435
        %v438 = vsel %vm375, %v433, %v436
        %v439 = vpack.c.bf16 %v438, %v438
        %v440 = vld [vmem:[%s3] sm:$0xf]
        %v441 = vld [vmem:[%s3 + $0x4] sm:$0xf]
        %v442 = vld [vmem:[%s3 + $0x8] sm:$0xf]
        %v443 = vld [vmem:[%s3 + $0xc] sm:$0xf]
        %v444 = vld [vmem:[%s3 + $0x10] sm:$0xf]
        %v445 = vld [vmem:[%s3 + $0x14] sm:$0xf]
        %v446 = vld [vmem:[%s3 + $0x18] sm:$0xf]
        %v447 = vld [vmem:[%s3 + $0x1c] sm:$0xf]
        %v456 = vunpack.c.l.b16 %v440
        %v457 = vunpack.c.l.b16 %v441
        %v458 = vunpack.c.l.b16 %v442
        %v459 = vunpack.c.l.b16 %v443
        %v460 = vunpack.c.l.b16 %v444
        %v461 = vunpack.c.l.b16 %v445
        %v462 = vunpack.c.l.b16 %v446
        %v463 = vunpack.c.l.b16 %v447
        %v464 = vpack.c.b16 %v457, %v456
        %v465 = vpack.c.b16 %v459, %v458
        %v466 = vpack.c.b16 %v461, %v460
        %v467 = vpack.c.b16 %v463, %v462
        %v473 = vrot.slane %v290, 2
        %vm475 = vcmask 523264
        %v477 = vsel %vm475, %v439, 0
        %479 = vmatprep.subr.bf16.mxu0 0
        %480 = vmatpush1.bf16.msra.mxu0 0
        %481 = vmatprep.subr.bf16.mxu0 0
        %482 = vmatpush1.bf16.msra.mxu0 0
        %483 = vmatprep.subr.bf16.mxu0 0
        %484 = vmatpush1.bf16.msra.mxu0 0
        %485 = vmatprep.subr.bf16.mxu0 0
        %486 = vmatpush1.bf16.msra.mxu0 0
        %487 = vmatprep.subr.bf16.mxu0 0
        %488 = vmatpush1.bf16.msra.mxu0 %v467
        %489 = vmatprep.subr.bf16.mxu0 0
        %490 = vmatpush1.bf16.msra.mxu0 %v466
        %491 = vmatprep.subr.bf16.mxu0 0
        %492 = vmatpush1.bf16.msra.mxu0 %v465
        %493 = vmatprep.subr.bf16.mxu0 0
        %494 = vmatpush1.bf16.msra.mxu0 %v464
        %495 = vmatprep.subr.bf16.mxu0 0
        %496 = vmatpush2.bf16.msra.mxu0 0
        %497 = vmatprep.subr.bf16.mxu0 0
        %498 = vmatpush2.bf16.msra.mxu0 0
        %499 = vmatprep.subr.bf16.mxu0 0
        %500 = vmatpush2.bf16.msra.mxu0 0
        %501 = vmatprep.subr.bf16.mxu0 0
        %502 = vmatpush2.bf16.msra.mxu0 0
        %503 = vmatprep.subr.bf16.mxu0 0
        %504 = vmatpush2.bf16.msra.mxu0 0
        %505 = vmatprep.subr.bf16.mxu0 0
        %506 = vmatpush2.bf16.msra.mxu0 0
        %507 = vmatprep.subr.bf16.mxu0 0
        %508 = vmatpush2.bf16.msra.mxu0 0
        %509 = vmatprep.subr.bf16.mxu0 0
        %510 = vmatpush2.bf16.msra.mxu0 0
        %511 = vmatprep.mubr.bf16.mxu0 0
        %512 = vmatmul.mubr.bf16.gmra.mxu0 %v477
        %v513 = vpop.f32.mrf.mxu0
        %v514 = vadd.f32 %v473, %v513
        %v515 = vpop.f32.mrf.mxu0
        %v516 = vpop.f32.mrf.mxu0
        %v517 = vpop.f32.mrf.mxu0
        %518 = vdwg.mxu0
        %v519 = vpack.c.bf16 %v417, %v414
        %v520 = vld [vmem:[%s4] sm:$0xf]
        %v521 = vld [vmem:[%s4 + $0x4] sm:$0xf]
        %v522 = vld [vmem:[%s4 + $0x8] sm:$0xf]
        %v523 = vld [vmem:[%s4 + $0xc] sm:$0xf]
        %v524 = vlaneseq
        %v525 = vshrl.u32 %v524, 7
        %v526 = vsub.s32 3, %v525
        %v527 = vrot.slane %v290, %v526
        %v532 = vunpack.c.l.b16 %v520
        %v533 = vunpack.c.l.b16 %v521
        %v534 = vunpack.c.l.b16 %v522
        %v535 = vunpack.c.l.b16 %v523
        %v536 = vpack.c.b16 %v533, %v532
        %v537 = vpack.c.b16 %v535, %v534
        %v541 = vsel %vm375, %v519, 0
        %543 = vmatprep.subr.bf16.mxu0 0
        %544 = vmatpush1.bf16.msra.mxu0 0
        %545 = vmatprep.subr.bf16.mxu0 0
        %546 = vmatpush1.bf16.msra.mxu0 0
        %547 = vmatprep.subr.bf16.mxu0 0
        %548 = vmatpush1.bf16.msra.mxu0 0
        %549 = vmatprep.subr.bf16.mxu0 0
        %550 = vmatpush1.bf16.msra.mxu0 0
        %551 = vmatprep.subr.bf16.mxu0 0
        %552 = vmatpush1.bf16.msra.mxu0 0
        %553 = vmatprep.subr.bf16.mxu0 0
        %554 = vmatpush1.bf16.msra.mxu0 0
        %555 = vmatprep.subr.bf16.mxu0 0
        %556 = vmatpush1.bf16.msra.mxu0 %v537
        %557 = vmatprep.subr.bf16.mxu0 0
        %558 = vmatpush1.bf16.msra.mxu0 %v536
        %559 = vmatprep.subr.bf16.mxu0 0
        %560 = vmatpush2.bf16.msra.mxu0 0
        %561 = vmatprep.subr.bf16.mxu0 0
        %562 = vmatpush2.bf16.msra.mxu0 0
        %563 = vmatprep.subr.bf16.mxu0 0
        %564 = vmatpush2.bf16.msra.mxu0 0
        %565 = vmatprep.subr.bf16.mxu0 0
        %566 = vmatpush2.bf16.msra.mxu0 0
        %567 = vmatprep.subr.bf16.mxu0 0
        %568 = vmatpush2.bf16.msra.mxu0 0
        %569 = vmatprep.subr.bf16.mxu0 0
        %570 = vmatpush2.bf16.msra.mxu0 0
        %571 = vmatprep.subr.bf16.mxu0 0
        %572 = vmatpush2.bf16.msra.mxu0 0
        %573 = vmatprep.subr.bf16.mxu0 0
        %574 = vmatpush2.bf16.msra.mxu0 0
        %575 = vmatprep.mubr.bf16.mxu0 0
        %576 = vmatmul.mubr.bf16.gmra.mxu0 %v541
        %v577 = vpop.f32.mrf.mxu0
        %v578 = vadd.f32 %v527, %v577
        %v579 = vpop.f32.mrf.mxu0
        %v580 = vpop.f32.mrf.mxu0
        %v581 = vadd.f32 %v527, %v580
        %v582 = vpop.f32.mrf.mxu0
        %583 = vdwg.mxu0
        %v584 = vlaneseq
        %v585 = vand.u32 %v584, 127
        %vm586 = vcmp.eq.s32.totalorder %v585, 0
        %v587 = vlaneseq
        %v588 = vshrl.u32 %v587, 7
        %v589 = vsub.s32 0, %v588
        %v590 = vrot.slane %v514, %v589
        %v591 = vmul.f32 %v578, %v590
        %v592 = vmul.f32 %v581, %v590
        %vm593 = vcmask 130048
        %v594 = vsel %vm593, %v591, 0.0
        %595 = vadd.xlane.f32.xlu0 %v594
        %v596 = vpop.xlane.xlu0 %595
        %vm597 = vcmask 122880
        %v598 = vsel %vm597, %v592, 0.0
        %599 = vadd.xlane.f32.xlu0 %v598
        %v600 = vpop.xlane.xlu0 %599
        %v601 = vmul.f32 %v596, 0.25
        %v602 = vmul.f32 %v600, 0.25
        %v605 = vlaneseq
        %v606 = vshrl.u32 %v605, 7
        %v607 = vsub.s32 %v585, %v606
        %v608 = vrot.slane %v601, %v607
        %v609 = vadd.s32 %v585, 4294967288
        %v610 = vlaneseq
        %v611 = vshrl.u32 %v610, 7
        %v612 = vsub.s32 %v609, %v611
        %v613 = vrot.slane %v602, %v612
        %vm614 = vcmask 130112
        %v615 = vsel %vm614, %v613, %v608
        %v617 = vsel %vm586, -1e+30, %v615
        %vm618 = vcmask 65536
        %v619 = vsel %vm618, %v617, -inf
        %620 = vmax.xlane.f32.xlu0 %v619
        %v621 = vpop.xlane.xlu0 %620
        %v622 = vsub.f32 %v617, %v621
        %v623 = vmul.f32 %v622, 1.442695
        %v624 = vpow.pop %v623
        %v625 = vsel %vm618, %v624, 0.0
        %626 = vadd.xlane.f32.xlu0 %v625
        %v627 = vpop.xlane.xlu0 %626
        %v628 = vrcp.pop %v627
        %v629 = vmul.f32 %v624, %v628
        %v630 = vlaneseq
        %v631 = vshrl.u32 %v630, 7
        %v632 = vsub.s32 0, %v631
        %v633 = vrot.slane %v629, %v632
        %635 = vbcast.lane.b32.xlu0 %v633, 256
        %v636 = vpop.permute.xlu0 %635
        %s638 = sor.u32 256, 8
        %639 = vbcast.lane.b32.xlu0 %v633, %s638
        %v640 = vpop.permute.xlu0 %639
        %v641 = vmul.f32 %v578, %v636
        %v642 = vmul.f32 %v581, %v640
        %vm643 = vcmask 523648
        %v644 = vsel %vm643, %v641, 0.0
        %vm645 = vcmask 516480
        %v646 = vsel %vm645, %v642, 0.0
        %v647 = vadd.f32 %v644, %v646
        %v648 = vrot.slane %v647, 4
        %v649 = vadd.f32 %v647, %v648
        %v650 = vrot.slane %v649, 2
        %v651 = vadd.f32 %v649, %v650
        %v652 = vrot.slane %v651, 1
        %v653 = vadd.f32 %v651, %v652
        %656 = vrot.lane.b32.xlu0 %v591, 112
        %v657 = vpop.permute.xlu0 %656
        %658 = vrot.lane.b32.xlu0 %v592, 112
        %v659 = vpop.permute.xlu0 %658
        %v662 = vsel %vm593, %v657, 0.0
        %663 = vadd.xlane.f32.xlu0 %v662
        %v664 = vpop.xlane.xlu0 %663
        %v665 = vsel %vm597, %v659, 0.0
        %666 = vadd.xlane.f32.xlu0 %v665
        %v667 = vpop.xlane.xlu0 %666
        %v668 = vmul.f32 %v664, 0.25
        %v669 = vmul.f32 %v667, 0.25
        %v672 = vlaneseq
        %v673 = vshrl.u32 %v672, 7
        %v674 = vsub.s32 %v585, %v673
        %v675 = vrot.slane %v668, %v674
        %v676 = vlaneseq
        %v677 = vshrl.u32 %v676, 7
        %v678 = vsub.s32 %v609, %v677
        %v679 = vrot.slane %v669, %v678
        %v680 = vsel %vm614, %v679, %v675
        %v682 = vsel %vm586, -1e+30, %v680
        %v683 = vsel %vm618, %v682, -inf
        %684 = vmax.xlane.f32.xlu0 %v683
        %v685 = vpop.xlane.xlu0 %684
        %v686 = vsub.f32 %v682, %v685
        %v687 = vmul.f32 %v686, 1.442695
        %v688 = vpow.pop %v687
        %v689 = vsel %vm618, %v688, 0.0
        %690 = vadd.xlane.f32.xlu0 %v689
        %v691 = vpop.xlane.xlu0 %690
        %v692 = vrcp.pop %v691
        %v693 = vmul.f32 %v688, %v692
        %v694 = vlaneseq
        %v695 = vshrl.u32 %v694, 7
        %v696 = vsub.s32 0, %v695
        %v697 = vrot.slane %v693, %v696
        %699 = vbcast.lane.b32.xlu0 %v697, 256
        %v700 = vpop.permute.xlu0 %699
        %s702 = sor.u32 256, 8
        %703 = vbcast.lane.b32.xlu0 %v697, %s702
        %v704 = vpop.permute.xlu0 %703
        %v705 = vmul.f32 %v578, %v700
        %v706 = vmul.f32 %v581, %v704
        %vm707 = vcmask 654848
        %v708 = vsel %vm707, %v705, 0.0
        %vm709 = vcmask 647680
        %v710 = vsel %vm709, %v706, 0.0
        %v711 = vadd.f32 %v708, %v710
        %v712 = vrot.slane %v711, 4
        %v713 = vadd.f32 %v711, %v712
        %v714 = vrot.slane %v713, 2
        %v715 = vadd.f32 %v713, %v714
        %v716 = vrot.slane %v715, 1
        %v717 = vadd.f32 %v715, %v716
        %718 = vrot.lane.b32.xlu0 %v591, 96
        %v719 = vpop.permute.xlu0 %718
        %720 = vrot.lane.b32.xlu0 %v592, 96
        %v721 = vpop.permute.xlu0 %720
        %v724 = vsel %vm593, %v719, 0.0
        %725 = vadd.xlane.f32.xlu0 %v724
        %v726 = vpop.xlane.xlu0 %725
        %v727 = vsel %vm597, %v721, 0.0
        %728 = vadd.xlane.f32.xlu0 %v727
        %v729 = vpop.xlane.xlu0 %728
        %v730 = vmul.f32 %v726, 0.25
        %v731 = vmul.f32 %v729, 0.25
        %v734 = vlaneseq
        %v735 = vshrl.u32 %v734, 7
        %v736 = vsub.s32 %v585, %v735
        %v737 = vrot.slane %v730, %v736
        %v738 = vlaneseq
        %v739 = vshrl.u32 %v738, 7
        %v740 = vsub.s32 %v609, %v739
        %v741 = vrot.slane %v731, %v740
        %v742 = vsel %vm614, %v741, %v737
        %v744 = vsel %vm586, -1e+30, %v742
        %v745 = vsel %vm618, %v744, -inf
        %746 = vmax.xlane.f32.xlu0 %v745
        %v747 = vpop.xlane.xlu0 %746
        %v748 = vsub.f32 %v744, %v747
        %v749 = vmul.f32 %v748, 1.442695
        %v750 = vpow.pop %v749
        %v751 = vsel %vm618, %v750, 0.0
        %752 = vadd.xlane.f32.xlu0 %v751
        %v753 = vpop.xlane.xlu0 %752
        %v754 = vrcp.pop %v753
        %v755 = vmul.f32 %v750, %v754
        %v756 = vlaneseq
        %v757 = vshrl.u32 %v756, 7
        %v758 = vsub.s32 0, %v757
        %v759 = vrot.slane %v755, %v758
        %761 = vbcast.lane.b32.xlu0 %v759, 256
        %v762 = vpop.permute.xlu0 %761
        %s764 = sor.u32 256, 8
        %765 = vbcast.lane.b32.xlu0 %v759, %s764
        %v766 = vpop.permute.xlu0 %765
        %v767 = vmul.f32 %v578, %v762
        %v768 = vmul.f32 %v581, %v766
        %vm769 = vcmask 786048
        %v770 = vsel %vm769, %v767, 0.0
        %vm771 = vcmask 778880
        %v772 = vsel %vm771, %v768, 0.0
        %v773 = vadd.f32 %v770, %v772
        %v774 = vrot.slane %v773, 4
        %v775 = vadd.f32 %v773, %v774
        %v776 = vrot.slane %v775, 2
        %v777 = vadd.f32 %v775, %v776
        %v778 = vrot.slane %v777, 1
        %v779 = vadd.f32 %v777, %v778
        %781 = vrot.lane.b32.xlu0 %v653, 80
        %v782 = vpop.permute.xlu0 %781
        %785 = vrot.lane.b32.xlu0 %v717, 80
        %v786 = vpop.permute.xlu0 %785
        %789 = vrot.lane.b32.xlu0 %v779, 80
        %v790 = vpop.permute.xlu0 %789
        %v792 = vsel %vm593, %v782, %v786
        %v793 = vsel %vm375, %v792, %v790
        %vm794 = vcmask 385024
        %795 = vst.msk [vmem:[%s271] sm:$0x1] %vm794, %v793
        %s796 = sand.u32 %s161, 1
        %s797 = scalar_lea.sflag [#allocation3], %s796
        %s798 = sand.u32 %s161, 1
        %s799 = scalar_lea.vmem [#allocation2], %s798
        %p800 = scmp.lt.s32.totalorder %s22, 1
        %s801 = scalar_select %p800, %s22, 1
        %s802 = smul.addr %s801, 2
        %s803 = smul.addr %s802, 8
        %s804 = scalar_lea.vmem %s7, %s803
        // Predicated region
        $region45: #{tpu_custom_call.1} parent=43 // pred_check
          %p805 = pneg %p171
        $region46: #{tpu_custom_call.1} parent=43 // pred_check_branch
          %807 = sbr.rel (%p805) target = $region48
        $region47: #{tpu_custom_call.1} parent=43 // pred_region
          %s809 = ssub.s32 16, 16
          %810 = vsyncadd %s797, %s809
          %s811 = smul.addr %s22, 16
          %s812 = scalar_lea.hbm %s6, %s811
          %s814 = sshll.u32 %s799, 4
          %s815 = int_to_ptr.vmem [resolvable:$true] %s814
          %817 = dma.vmem_to_hbm [thread:$0]  %s815, 16, %s812, %s797
        $region48: #{tpu_custom_call.1} parent=43 // pred_fallthru
          _
        // Predicated region
        $region49: #{tpu_custom_call.1} parent=43 // pred_check
          %p818 = pneg %p197
        $region50: #{tpu_custom_call.1} parent=43 // pred_check_branch
          %820 = sbr.rel (%p818) target = $region52
        $region51: #{tpu_custom_call.1} parent=43 // pred_region
          _
        $region52: #{tpu_custom_call.1} parent=43 // pred_fallthru
          _
      $region44: #{tpu_custom_call.1} parent=5 // pred_fallthru
        _
      %p821 = scmp.le.s32.totalorder 2, %s17
      // Predicated region
      $region53: #{tpu_custom_call.1} parent=5 // pred_check
        %p822 = pneg %p821
      $region54: #{tpu_custom_call.1} parent=5 // pred_check_branch
        %824 = sbr.rel (%p822) target = $region56
      $region55: #{tpu_custom_call.1} parent=5 // pred_region
        %s825 = ssub.s32 %s17, 2
        // Predicated region
        $region57: #{tpu_custom_call.1} parent=55 // pred_check
          %p826 = pneg %p177
        $region58: #{tpu_custom_call.1} parent=55 // pred_check_branch
          %828 = sbr.rel (%p826) target = $region60
        $region59: #{tpu_custom_call.1} parent=55 // pred_region
          %s829 = sand.u32 %s162, 1
          %s830 = scalar_lea.sflag [#allocation3], %s829
          %s831 = sand.u32 %s162, 1
          %s832 = scalar_lea.vmem [#allocation2], %s831
          %833 = dma.done %s830, 16
        $region60: #{tpu_custom_call.1} parent=55 // pred_fallthru
          _
        // Predicated region
        $region61: #{tpu_custom_call.1} parent=55 // pred_check
          %p834 = pneg %p203
        $region62: #{tpu_custom_call.1} parent=55 // pred_check_branch
          %836 = sbr.rel (%p834) target = $region64
        $region63: #{tpu_custom_call.1} parent=55 // pred_region
          %p837 = scmp.lt.s32.totalorder %s23, 1
          %s838 = scalar_select %p837, %s23, 1
          %s839 = smul.addr %s838, 2
          %s840 = smul.addr %s839, 8
          %s841 = scalar_lea.vmem %s7, %s840
        $region64: #{tpu_custom_call.1} parent=55 // pred_fallthru
          _
      $region56: #{tpu_custom_call.1} parent=5 // pred_fallthru
        _
    $region6: #{tpu_custom_call.1} parent=1 // loop_footer
      %s21 = sadd.s32 1, %s17
    $region7: #{tpu_custom_call.1} parent=1 // loop_footer_branch
      %16 = sbr.rel target = $region3
    $region8: #{tpu_custom_call.1} parent=1 // loop_exit
      _
    %842 = vsyncpa [#allocation3], 1
    %s843 = scalar_lea.sflag [#allocation3], 1
    %844 = vsyncpa %s843, 1

</llo_original>
